<compile_context>
chip_gen: v6e
topology: v6e:2x2x1
jax: 0.10.0
libtpu: 0.0.40
codegen_flags: <defaults>
</compile_context>

<pallas_src>
import jax
import jax.numpy as jnp
from jax.experimental import pallas as pl
from jax.experimental.pallas import tpu as pltpu

NUM_REPEATS = 10


def _mm_repeat_kernel(x1_ref, x2_ref, out_ref):
    # x1_ref: (M, K), x2_ref: (K, 1), out_ref: (1, NUM_REPEATS * M) lane-major.
    M, _ = x1_ref.shape
    R = NUM_REPEATS

    # Single MXU matmul, f32 accumulation.  v: (M, 1).
    v = jnp.dot(x1_ref[...], x2_ref[...], preferred_element_type=jnp.float32)

    # Place the M results on the lane axis, repeated R times:
    #   out[0, j] = v[j % M, 0]
    # Built from lane-broadcast + iota mask + sublane reduce, avoiding
    # transpose/reshape/tile of unaligned tiny shapes entirely.
    lane = jax.lax.broadcasted_iota(jnp.int32, (M, R * M), 1)
    sub = jax.lax.broadcasted_iota(jnp.int32, (M, R * M), 0)
    sel = (lane % M) == sub                                   # (M, R*M) mask
    v_b = jnp.broadcast_to(v, (M, R * M))                     # lane broadcast of (M, 1)
    row = jnp.sum(jnp.where(sel, v_b, 0.0), axis=0, keepdims=True)  # (1, R*M)

    out_ref[...] = row.astype(out_ref.dtype)


def _padded_tile_bytes(shape, dtype):
    # (8, 128)-tile-padded VMEM footprint of a 2-D array.
    r = -(-shape[0] // 8) * 8
    c = -(-shape[1] // 128) * 128
    return r * c * jnp.dtype(dtype).itemsize


def mm_repeat_cat(x1, x2):
    M, K = x1.shape
    K2, N = x2.shape
    assert K == K2
    assert N == 1, "kernel specialised to the module's (K, 1) second operand"

    out_lm_shape = (N, NUM_REPEATS * M)  # lane-major: (1, 20)
    bytes_accessed = (
        _padded_tile_bytes((M, K), x1.dtype)
        + _padded_tile_bytes((K, N), x2.dtype)
        + _padded_tile_bytes(out_lm_shape, x1.dtype)
    )

    out_lm = pl.pallas_call(
        _mm_repeat_kernel,
        out_shape=jax.ShapeDtypeStruct(out_lm_shape, x1.dtype),
        in_specs=[
            pl.BlockSpec(memory_space=pltpu.MemorySpace.VMEM),
            pl.BlockSpec(memory_space=pltpu.MemorySpace.VMEM),
        ],
        out_specs=pl.BlockSpec(memory_space=pltpu.MemorySpace.VMEM),
        cost_estimate=pl.CostEstimate(
            flops=2 * M * K * N + NUM_REPEATS * M * N,
            transcendentals=0,
            bytes_accessed=bytes_accessed,
        ),
    )(x1, x2)

    # (1, R*M) -> (R*M, 1): with N == 1 the flat element order already matches
    # torch.cat(..., dim=0), so this is a metadata-only reshape (no transpose).
    return out_lm.reshape(NUM_REPEATS * M, N)


if __name__ == "__main__":
    key = jax.random.PRNGKey(0)
    k1, k2 = jax.random.split(key)
    # Shapes from the PyTorch script: x1 = randn(2, 3), x2 = randn(3, 1)
    x1 = jax.random.normal(k1, (2, 3), dtype=jnp.float32)
    x2 = jax.random.normal(k2, (3, 1), dtype=jnp.float32)

    out = mm_repeat_cat(x1, x2)
    out = jax.block_until_ready(out)

    # Reference (pure JAX): cat of 10 identical matmuls along axis 0.
    ref = jnp.concatenate([x1 @ x2 for _ in range(NUM_REPEATS)], axis=0)
    assert out.shape == (NUM_REPEATS * 2, 1), out.shape
    assert jnp.allclose(out, ref, atol=1e-5, rtol=1e-5)

    print("KERNEL_OK")
</pallas_src>

<mosaic_0001>
module attributes {stable_mosaic.version = 11 : i64} {
  func.func @_mm_repeat_kernel(%arg0: memref<2x3xf32, #tpu.memory_space<vmem>>, %arg1: memref<3x1xf32, #tpu.memory_space<vmem>>, %arg2: memref<1x20xf32, #tpu.memory_space<vmem>>) attributes {dimension_semantics = [], scalar_prefetch = 0 : i64, scratch_operands = 0 : i64, tpu.core_type = #tpu.core_type<tc>} {
    %c0 = arith.constant 0 : index
    %c0_0 = arith.constant 0 : index
    %0 = vector.load %arg0[%c0, %c0_0] : memref<2x3xf32, #tpu.memory_space<vmem>>, vector<2x3xf32>
    %c0_1 = arith.constant 0 : index
    %c0_2 = arith.constant 0 : index
    %1 = vector.load %arg1[%c0_1, %c0_2] : memref<3x1xf32, #tpu.memory_space<vmem>>, vector<3x1xf32>
    %cst = arith.constant dense<0.000000e+00> : vector<2x1xf32>
    %2 = tpu.matmul %0, %1, %cst {dimension_numbers = #tpu.dot_dimension_numbers<[1], [0], [0], [1], [0, 0, 1, 1], [], []>} : vector<2x3xf32>, vector<3x1xf32>, vector<2x1xf32> -> vector<2x1xf32>
    %3 = tpu.iota {dimensions = array<i32: 1>} : vector<2x20xi32>
    %4 = tpu.iota {dimensions = array<i32: 0>} : vector<2x20xi32>
    %c2_i32 = arith.constant 2 : i32
    %c0_i32 = arith.constant 0 : i32
    %5 = arith.cmpi eq, %c2_i32, %c0_i32 : i32
    %c1_i32 = arith.constant 1 : i32
    %6 = arith.select %5, %c1_i32, %c2_i32 : i32
    %7 = vector.broadcast %6 : i32 to vector<2x20xi32>
    %8 = arith.remsi %3, %7 : vector<2x20xi32>
    %c0_i32_3 = arith.constant 0 : i32
    %9 = vector.broadcast %c0_i32_3 : i32 to vector<2x20xi32>
    %10 = arith.cmpi ne, %8, %9 : vector<2x20xi32>
    %c0_i32_4 = arith.constant 0 : i32
    %11 = vector.broadcast %c0_i32_4 : i32 to vector<2x20xi32>
    %12 = arith.cmpi slt, %8, %11 : vector<2x20xi32>
    %c0_i32_5 = arith.constant 0 : i32
    %13 = arith.cmpi slt, %6, %c0_i32_5 : i32
    %14 = vector.broadcast %13 : i1 to vector<2x20xi1>
    %15 = vector.broadcast %14 : vector<2x20xi1> to vector<2x20xi1>
    %16 = arith.xori %12, %15 : vector<2x20xi1>
    %17 = arith.andi %16, %10 : vector<2x20xi1>
    %18 = vector.broadcast %6 : i32 to vector<2x20xi32>
    %19 = arith.addi %8, %18 : vector<2x20xi32>
    %20 = arith.select %17, %19, %8 : vector<2x20xi1>, vector<2x20xi32>
    %21 = arith.cmpi eq, %20, %4 : vector<2x20xi32>
    %22 = vector.shape_cast %2 : vector<2x1xf32> to vector<2x1xf32>
    %23 = vector.broadcast %22 : vector<2x1xf32> to vector<2x20xf32>
    %cst_6 = arith.constant 0.000000e+00 : f32
    %24 = vector.broadcast %cst_6 : f32 to vector<2x20xf32>
    %25 = arith.select %21, %23, %24 : vector<2x20xi1>, vector<2x20xf32>
    %cst_7 = arith.constant dense<0.000000e+00> : vector<20xf32>
    %26 = vector.multi_reduction <add>, %25, %cst_7 [0] : vector<2x20xf32> to vector<20xf32>
    %27 = vector.shape_cast %26 : vector<20xf32> to vector<1x20xf32>
    %c0_8 = arith.constant 0 : index
    %c0_9 = arith.constant 0 : index
    %28 = vector.load %arg2[%c0_8, %c0_9] : memref<1x20xf32, #tpu.memory_space<vmem>>, vector<1x20xf32>
    tpu.vector_store %arg2[%c0_8, %c0_9], %27 {strides = array<i32>} : memref<1x20xf32, #tpu.memory_space<vmem>>, vector<1x20xf32>,
    return
  }
}

</mosaic_0001>

<llo_original>
// kernel: tpu_custom_call.1
$region0: #{tpu_custom_call.1}
  #allocation0 [shape = 'u32[]', space=smem, size = 0x4, offset = 0x4, fixed_abs, tag = 'smem constant byte address 0x4 - core index']
  #allocation1 [shape = 'u32[144,128]{1,0:T(1,128)}', space=vmem, size = 0x12000, scoped, tag = 'internal scratch']
  %s0 = inlined_call_operand.vmem [shape: f32[2,3], index: 0, kind: input, shape index: {}]
  %s1 = inlined_call_operand.vmem [shape: f32[3,1], index: 1, kind: input, shape index: {}]
  %s2 = inlined_call_operand.hbm [shape: f32[1,20], index: 2, kind: output, shape index: {}]
  %s3 = sld [smem:[#allocation0]]
  $region18: #{tpu_custom_call.1} parent=0
    _
  %s5 = ssub.s32 1, %s3
  %s6 = scalar_select 0, %s5, %s3
  $region1: #{tpu_custom_call.1} parent=0
    #allocation2 [shape = 'u8[512]{0}', space=vmem, size = 0x400, scoped, tag = 'output window, operand 0, single buffered']
    #allocation3 [shape = 's32[1]{0}', space=sflag, size = 0x4, scoped, tag = 'scoped memory for tpu_custom_call.1']
    %7 = vsyncpa [#allocation3], 0
    // Predicated region
    $region2: #{tpu_custom_call.1} parent=1 // pred_check
      _
    $region3: #{tpu_custom_call.1} parent=1 // pred_check_branch
      %9 = sbr.rel (0) target = $region5
    $region4: #{tpu_custom_call.1} parent=1 // pred_region
      _
    $region5: #{tpu_custom_call.1} parent=1 // pred_fallthru
      _
    // Predicated region
    $region6: #{tpu_custom_call.1} parent=1 // pred_check
      _
    $region7: #{tpu_custom_call.1} parent=1 // pred_check_branch
      %11 = sbr.rel (0) target = $region9
    $region8: #{tpu_custom_call.1} parent=1 // pred_region
      _
    $region9: #{tpu_custom_call.1} parent=1 // pred_fallthru
      _
    %v12 = vld [vmem:[%s0] sm:$0x3]
    %v13 = vld [vmem:[%s1] sm:$0x7]
    %vm14 = vcmask 23552
    %v16 = vsel %vm14, %v12, 0
    %vm18 = vcmask 1042432
    %v20 = vsel %vm18, %v13, 0
    %22 = vmatprep.subr.mxu0 0.0
    %23 = vmatpush1.msra.mxu0 0.0
    %24 = vmatprep.subr.mxu0 0.0
    %25 = vmatpush1.msra.mxu0 0.0
    %26 = vmatprep.subr.mxu0 0.0
    %27 = vmatpush1.msra.mxu0 0.0
    %28 = vmatprep.subr.mxu0 0.0
    %29 = vmatpush1.msra.mxu0 0.0
    %30 = vmatprep.subr.mxu0 0.0
    %31 = vmatpush1.msra.mxu0 0.0
    %32 = vmatprep.subr.mxu0 0.0
    %33 = vmatpush1.msra.mxu0 0.0
    %34 = vmatprep.subr.mxu0 0.0
    %35 = vmatpush1.msra.mxu0 0.0
    %36 = vmatprep.subr.mxu0 0.0
    %37 = vmatpush1.msra.mxu0 0.0
    %38 = vmatprep.subr.mxu0 0.0
    %39 = vmatpush1.msra.mxu0 0.0
    %40 = vmatprep.subr.mxu0 0.0
    %41 = vmatpush1.msra.mxu0 0.0
    %42 = vmatprep.subr.mxu0 0.0
    %43 = vmatpush1.msra.mxu0 0.0
    %44 = vmatprep.subr.mxu0 0.0
    %45 = vmatpush1.msra.mxu0 0.0
    %46 = vmatprep.subr.mxu0 0.0
    %47 = vmatpush1.msra.mxu0 0.0
    %48 = vmatprep.subr.mxu0 0.0
    %49 = vmatpush1.msra.mxu0 0.0
    %50 = vmatprep.subr.mxu0 0.0
    %51 = vmatpush1.msra.mxu0 0.0
    %52 = vmatprep.subr.mxu0 0.0
    %53 = vmatpush1.msra.mxu0 %v20
    %54 = vmatprep.subr.mxu0 0.0
    %55 = vmatpush2.msra.mxu0 0.0
    %56 = vmatprep.subr.mxu0 0.0
    %57 = vmatpush2.msra.mxu0 0.0
    %58 = vmatprep.subr.mxu0 0.0
    %59 = vmatpush2.msra.mxu0 0.0
    %60 = vmatprep.subr.mxu0 0.0
    %61 = vmatpush2.msra.mxu0 0.0
    %62 = vmatprep.subr.mxu0 0.0
    %63 = vmatpush2.msra.mxu0 0.0
    %64 = vmatprep.subr.mxu0 0.0
    %65 = vmatpush2.msra.mxu0 0.0
    %66 = vmatprep.subr.mxu0 0.0
    %67 = vmatpush2.msra.mxu0 0.0
    %68 = vmatprep.subr.mxu0 0.0
    %69 = vmatpush2.msra.mxu0 0.0
    %70 = vmatprep.subr.mxu0 0.0
    %71 = vmatpush2.msra.mxu0 0.0
    %72 = vmatprep.subr.mxu0 0.0
    %73 = vmatpush2.msra.mxu0 0.0
    %74 = vmatprep.subr.mxu0 0.0
    %75 = vmatpush2.msra.mxu0 0.0
    %76 = vmatprep.subr.mxu0 0.0
    %77 = vmatpush2.msra.mxu0 0.0
    %78 = vmatprep.subr.mxu0 0.0
    %79 = vmatpush2.msra.mxu0 0.0
    %80 = vmatprep.subr.mxu0 0.0
    %81 = vmatpush2.msra.mxu0 0.0
    %82 = vmatprep.subr.mxu0 0.0
    %83 = vmatpush2.msra.mxu0 0.0
    %84 = vmatprep.subr.mxu0 0.0
    %85 = vmatpush2.msra.mxu0 0.0
    %86 = vmatprep.mubr.f32.mxu0 0.0
    %87 = vmatmul.mubr.f32.gmra.mxu0 %v16
    %v88 = vpop.f32.mrf.mxu0
    %v89 = vadd.f32 0.0, %v88
    %v90 = vpop.f32.mrf.mxu0
    %91 = vdwg.mxu0
    %v92 = vlaneseq
    %v93 = vand.u32 %v92, 127
    %v94 = vlaneseq
    %v95 = vshrl.u32 %v94, 7
    %vm96 = vcmp.lt.s32.totalorder %v93, 0
    %v97 = vsub.s32 0, %v93
    %v98 = vsel %vm96, %v97, %v93
    %v99 = vshrl.u32 %v98, 1
    %v100 = vand.u32 %v98, 1
    %v101 = vsub.s32 0, %v100
    %v102 = vsel %vm96, %v101, %v100
    %vm103 = vcmp.ne.s32.totalorder %v102, 0
    %vm104 = vcmp.lt.s32.totalorder %v102, 0
    %vm105 = vmand %vm104, %vm103
    %v106 = vadd.s32 %v102, 2
    %v107 = vsel %vm105, %v106, %v102
    %vm108 = vcmp.eq.s32.totalorder %v107, %v95
    %110 = vset.pattern.permute.xlu0 0
    %111 = vperm.xlu0 %110, %v89
    %v112 = vpop.permute.xlu0 %111
    %v114 = vsel %vm108, %v112, 0.0
    %vm115 = vcmask 156672
    %v116 = vsel %vm115, %v114, 0.0
    %v117 = vrot.slane %v116, 4
    %v118 = vadd.f32 %v116, %v117
    %v119 = vrot.slane %v118, 2
    %v120 = vadd.f32 %v118, %v119
    %v121 = vrot.slane %v120, 1
    %v122 = vadd.f32 %v120, %v121
    %vm123 = vcmask 155648
    %124 = vst.msk [vmem:[#allocation2] sm:$0x1] %vm123, %v122
    // Predicated region
    $region10: #{tpu_custom_call.1} parent=1 // pred_check
      _
    $region11: #{tpu_custom_call.1} parent=1 // pred_check_branch
      %126 = sbr.rel (0) target = $region13
    $region12: #{tpu_custom_call.1} parent=1 // pred_region
      %s128 = ssub.s32 16, 16
      %129 = vsyncadd [#allocation3], %s128
      %s131 = sshll.u32 [#allocation2], 4
      %s132 = int_to_ptr.vmem [resolvable:$true] %s131
      %134 = dma.vmem_to_hbm [thread:$0]  %s132, 16, %s2, [#allocation3]
    $region13: #{tpu_custom_call.1} parent=1 // pred_fallthru
      _
    // Predicated region
    $region14: #{tpu_custom_call.1} parent=1 // pred_check
      _
    $region15: #{tpu_custom_call.1} parent=1 // pred_check_branch
      %136 = sbr.rel (0) target = $region17
    $region16: #{tpu_custom_call.1} parent=1 // pred_region
      %137 = dma.done [#allocation3], 16
    $region17: #{tpu_custom_call.1} parent=1 // pred_fallthru
      _
    %138 = vsyncpa [#allocation3], 1

</llo_original>
